<compile_context>
chip_gen: v6e
topology: v6e:2x2x1
jax: 0.10.0
libtpu: 0.0.40
codegen_flags: <defaults>
</compile_context>

<pallas_src>
import functools
import math

import jax
import jax.numpy as jnp
from jax.experimental import pallas as pl
from jax.experimental.pallas import tpu as pltpu


DEFAULT_EPS = 1e-05


def _rmsnorm_kernel(x_ref, w_ref, o_ref, *, eps, approx_recip, scale_in_io_dtype):
    # x_ref: (tile_rows, hidden); w_ref: (1, hidden)
    x = x_ref[...]
    x32 = x.astype(jnp.float32)
    ms = jnp.mean(x32 * x32, axis=-1, keepdims=True)              # (tile_rows, 1)
    # eps is added OUTSIDE the sqrt, exactly as in the PyTorch reference.
    inv = pl.reciprocal(jnp.sqrt(ms) + eps, approx=approx_recip)  # narrow col -> EUP
    if scale_in_io_dtype:
        out = x * inv.astype(o_ref.dtype) * w_ref[...].astype(o_ref.dtype)
    else:
        out = (x32 * inv) * w_ref[...].astype(jnp.float32)
    o_ref[...] = out.astype(o_ref.dtype)


def _rmsnorm_bias_kernel(x_ref, w_ref, b_ref, o_ref, *, eps, approx_recip,
                         scale_in_io_dtype):
    x = x_ref[...]
    x32 = x.astype(jnp.float32)
    ms = jnp.mean(x32 * x32, axis=-1, keepdims=True)
    inv = pl.reciprocal(jnp.sqrt(ms) + eps, approx=approx_recip)
    if scale_in_io_dtype:
        out = (x * inv.astype(o_ref.dtype) * w_ref[...].astype(o_ref.dtype)
               + b_ref[...].astype(o_ref.dtype))
    else:
        out = (x32 * inv) * w_ref[...].astype(jnp.float32) \
              + b_ref[...].astype(jnp.float32)
    o_ref[...] = out.astype(o_ref.dtype)


def _has_low_precision_vpu():
    # v6e / v7x have bf16 VALUs; v5e and earlier do not (bf16 math would just
    # insert extra converts there).
    try:
        kind = jax.devices()[0].device_kind.lower()
        return not any(tag in kind for tag in ("v2", "v3", "v4", "v5"))
    except Exception:
        return False


def _choose_tile_rows(rows, hidden, itemsize, requested=None):
    if requested is None:
        target_bytes = 4 << 20                       # ~4 MiB per x block
        tile = max(8, target_bytes // max(1, hidden * itemsize))
        tile = min(int(tile), 2048)
    else:
        tile = int(requested)
    tile = max(8, (tile // 8) * 8)                   # sublane-aligned
    if tile >= rows:
        return rows                                  # full-extent block (always legal)
    return tile


def rmsnorm(x, weight, bias=None, *, eps=DEFAULT_EPS, tile_rows=None):
    """Pallas RMSNorm matching the PyTorch reference forward pass.

    x: (..., hidden); weight: (hidden,); bias: (hidden,) or None.
    norm = sqrt(mean(x^2, -1)) + eps ; out = x / norm * weight (+ bias)
    """
    orig_shape = x.shape
    hidden = orig_shape[-1]
    rows = int(math.prod(orig_shape[:-1]))
    x2d = x.reshape(rows, hidden)
    itemsize = jnp.dtype(x.dtype).itemsize

    tr = _choose_tile_rows(rows, hidden, itemsize, tile_rows)
    grid = (pl.cdiv(rows, tr),)  # no padding: partial tail block is clipped

    w2d = weight.reshape(1, hidden)

    scale_in_io_dtype = (x.dtype == jnp.bfloat16) and _has_low_precision_vpu()
    approx_recip = x.dtype != jnp.float32  # keep full accuracy for f32 outputs

    # Explicit VMEM budget: double-buffered in + out blocks plus params, with
    # headroom; clamped well under v7x's 64 MiB physical VMEM.
    blk = tr * hidden * itemsize
    pbytes = hidden * jnp.dtype(weight.dtype).itemsize
    if bias is not None:
        pbytes += hidden * jnp.dtype(bias.dtype).itemsize
    needed = 4 * blk + 2 * pbytes + (2 << 20)
    vmem_limit = int(min(max(needed, 16 << 20), 48 << 20))

    x_spec = pl.BlockSpec((tr, hidden), lambda i: (i, 0))
    p_spec = pl.BlockSpec((1, hidden), lambda i: (0, 0))
    o_spec = pl.BlockSpec((tr, hidden), lambda i: (i, 0))

    if bias is None:
        kernel = functools.partial(_rmsnorm_kernel, eps=eps,
                                   approx_recip=approx_recip,
                                   scale_in_io_dtype=scale_in_io_dtype)
        operands = (x2d, w2d)
        in_specs = [x_spec, p_spec]
    else:
        kernel = functools.partial(_rmsnorm_bias_kernel, eps=eps,
                                   approx_recip=approx_recip,
                                   scale_in_io_dtype=scale_in_io_dtype)
        operands = (x2d, w2d, bias.reshape(1, hidden))
        in_specs = [x_spec, p_spec, p_spec]

    out = pl.pallas_call(
        kernel,
        out_shape=jax.ShapeDtypeStruct((rows, hidden), x.dtype),
        grid_spec=pltpu.PrefetchScalarGridSpec(
            num_scalar_prefetch=0,
            grid=grid,
            in_specs=in_specs,
            out_specs=o_spec,
        ),
        compiler_params=pltpu.CompilerParams(
            dimension_semantics=("parallel",),
            vmem_limit_bytes=vmem_limit,
        ),
    )(*operands)

    return out.reshape(orig_shape)


def _reference(x, weight, bias=None, eps=DEFAULT_EPS):
    x32 = x.astype(jnp.float32)
    norm = jnp.sqrt(jnp.mean(x32 * x32, axis=-1, keepdims=True)) + eps
    out = (x32 / norm) * weight.astype(jnp.float32)
    if bias is not None:
        out = out + bias.astype(jnp.float32)
    return out.astype(x.dtype)


if __name__ == "__main__":
    key = jax.random.PRNGKey(0)

    # Test 1: module defaults (bias=False), fan_in = hidden = 128.
    batch, seq, hidden = 2, 8, 128
    x = jax.random.normal(key, (batch, seq, hidden), dtype=jnp.float32)
    weight = jnp.ones((hidden,), dtype=jnp.float32)  # nn.Parameter(torch.ones)

    out = rmsnorm(x, weight)
    jax.block_until_ready(out)
    ref = _reference(x, weight)
    assert out.shape == x.shape and out.dtype == x.dtype
    assert jnp.allclose(out, ref, atol=1e-5, rtol=1e-5)

    # Test 2: bias path + rows not a multiple of the tile, exercising the
    # cdiv grid with a clipped partial last block (no padding copy).
    k1, k2, k3 = jax.random.split(key, 3)
    x2 = jax.random.normal(k1, (3, 7, hidden), dtype=jnp.float32)
    w2 = jax.random.normal(k2, (hidden,), dtype=jnp.float32)
    b2 = jax.random.normal(k3, (hidden,), dtype=jnp.float32)
    out2 = rmsnorm(x2, w2, b2, tile_rows=8)
    jax.block_until_ready(out2)
    ref2 = _reference(x2, w2, b2)
    assert out2.shape == x2.shape and out2.dtype == x2.dtype
    assert jnp.allclose(out2, ref2, atol=1e-5, rtol=1e-5)

    # Test 3: bf16 input path (exercises the low-precision scale/write-out
    # branch on v6e/v7x and the approx reciprocal); loose tolerance since the
    # I/O dtype is bf16 either way.
    x3 = jax.random.normal(k1, (2, 8, hidden), dtype=jnp.bfloat16)
    w3 = jnp.ones((hidden,), dtype=jnp.bfloat16)
    out3 = rmsnorm(x3, w3)
    jax.block_until_ready(out3)
    ref3 = _reference(x3, w3)
    assert out3.shape == x3.shape and out3.dtype == x3.dtype
    assert jnp.allclose(out3.astype(jnp.float32), ref3.astype(jnp.float32),
                        atol=5e-2, rtol=5e-2)

    print("KERNEL_OK")
</pallas_src>

<mosaic_0001>
module attributes {stable_mosaic.version = 11 : i64} {
  func.func @_rmsnorm_kernel(%arg0: i32, %arg1: memref<16x128xf32, #tpu.memory_space<vmem>>, %arg2: memref<1x128xf32, #tpu.memory_space<vmem>>, %arg3: memref<16x128xf32, #tpu.memory_space<vmem>>) attributes {dimension_semantics = [#tpu.dimension_semantics<parallel>], iteration_bounds = array<i64: 1>, scalar_prefetch = 0 : i64, scratch_operands = 0 : i64, tpu.core_type = #tpu.core_type<tc>, window_params = [{transform_indices = @transform_0, window_bounds = array<i64: 16, 128>}, {pipeline_mode = #tpu.pipeline_mode<synchronous>, transform_indices = @transform_1, window_bounds = array<i64: 1, 128>}, {transform_indices = @transform_2, window_bounds = array<i64: 16, 128>}]} {
    %c0 = arith.constant 0 : index
    %c0_0 = arith.constant 0 : index
    %0 = vector.load %arg1[%c0, %c0_0] : memref<16x128xf32, #tpu.memory_space<vmem>>, vector<16x128xf32>
    %1 = arith.mulf %0, %0 : vector<16x128xf32>
    %cst = arith.constant dense<0.000000e+00> : vector<16xf32>
    %2 = vector.multi_reduction <add>, %1, %cst [1] : vector<16x128xf32> to vector<16xf32>
    %3 = vector.shape_cast %2 : vector<16xf32> to vector<16x1xf32>
    %cst_1 = arith.constant 1.280000e+02 : f32
    %4 = vector.broadcast %cst_1 : f32 to vector<16x1xf32>
    %5 = arith.divf %3, %4 : vector<16x1xf32>
    %6 = math.sqrt %5 : vector<16x1xf32>
    %cst_2 = arith.constant 9.99999974E-6 : f32
    %7 = vector.broadcast %cst_2 : f32 to vector<16x1xf32>
    %8 = arith.addf %6, %7 : vector<16x1xf32>
    %9 = tpu.reciprocal %8 : vector<16x1xf32> -> vector<16x1xf32>
    %10 = vector.broadcast %9 : vector<16x1xf32> to vector<16x128xf32>
    %11 = arith.mulf %0, %10 : vector<16x128xf32>
    %c0_3 = arith.constant 0 : index
    %c0_4 = arith.constant 0 : index
    %12 = vector.load %arg2[%c0_3, %c0_4] : memref<1x128xf32, #tpu.memory_space<vmem>>, vector<1x128xf32>
    %13 = vector.broadcast %12 : vector<1x128xf32> to vector<16x128xf32>
    %14 = arith.mulf %11, %13 : vector<16x128xf32>
    %c0_5 = arith.constant 0 : index
    %c0_6 = arith.constant 0 : index
    %15 = vector.load %arg3[%c0_5, %c0_6] : memref<16x128xf32, #tpu.memory_space<vmem>>, vector<16x128xf32>
    tpu.vector_store %arg3[%c0_5, %c0_6], %14 {strides = array<i32>} : memref<16x128xf32, #tpu.memory_space<vmem>>, vector<16x128xf32>,
    return
  }
  func.func @transform_0(%arg0: i32) -> (i32, i32) {
    %c0_i32 = arith.constant 0 : i32
    %c0_i32_0 = arith.constant 0 : i32
    return %arg0, %c0_i32 : i32, i32
  }
  func.func @transform_1(%arg0: i32) -> (i32, i32) {
    %c0_i32 = arith.constant 0 : i32
    %c0_i32_0 = arith.constant 0 : i32
    %c0_i32_1 = arith.constant 0 : i32
    return %c0_i32, %c0_i32_0 : i32, i32
  }
  func.func @transform_2(%arg0: i32) -> (i32, i32) {
    %c0_i32 = arith.constant 0 : i32
    %c0_i32_0 = arith.constant 0 : i32
    return %arg0, %c0_i32 : i32, i32
  }
}

</mosaic_0001>

<llo_original>
// kernel: tpu_custom_call.1
$region0: #{tpu_custom_call.1}
  #allocation0 [shape = 'u32[]', space=smem, size = 0x4, offset = 0x4, fixed_abs, tag = 'smem constant byte address 0x4 - core index']
  #allocation1 [shape = 'u32[144,128]{1,0:T(1,128)}', space=vmem, size = 0x12000, scoped, tag = 'internal scratch']
  %s0 = inlined_call_operand.hbm [shape: f32[16,128], index: 0, kind: input, shape index: {}]
  %s1 = inlined_call_operand.vmem [shape: f32[1,128], index: 1, kind: input, shape index: {}]
  %s2 = inlined_call_operand.hbm [shape: f32[16,128], index: 2, kind: output, shape index: {}]
  %s3 = sld [smem:[#allocation0]]
  $region22: #{tpu_custom_call.1} parent=0
    _
  %s5 = ssub.s32 1, %s3
  %s6 = scalar_select 0, %s5, %s3
  $region1: #{tpu_custom_call.1} parent=0
    #allocation2 [shape = 'u8[8192]{0}', space=vmem, size = 0x2000, scoped, tag = 'input window, operand 0, single buffered']
    #allocation3 [shape = 's32[1]{0}', space=sflag, size = 0x4, scoped, tag = 'scoped memory for tpu_custom_call.1']
    #allocation4 [shape = 's32[1]{0}', space=sflag, size = 0x4, scoped, tag = 'scoped memory for tpu_custom_call.1']
    #allocation5 [shape = 'u8[8192]{0}', space=vmem, size = 0x2000, scoped, tag = 'output window, operand 0, single buffered']
    %7 = vsyncpa [#allocation3], 0
    %8 = vsyncpa [#allocation4], 0
    // Predicated region
    $region2: #{tpu_custom_call.1} parent=1 // pred_check
      _
    $region3: #{tpu_custom_call.1} parent=1 // pred_check_branch
      %10 = sbr.rel (0) target = $region5
    $region4: #{tpu_custom_call.1} parent=1 // pred_region
      %s12 = ssub.s32 256, 256
      %13 = vsyncadd [#allocation3], %s12
      %s14 = sshll.u32 [#allocation2], 4
      %s15 = int_to_ptr.vmem [resolvable:$true] %s14
      %20 = dma.hbm_to_vmem [thread:$0]  %s0, 256, %s15, [#allocation3], 128, 128, 8
    $region5: #{tpu_custom_call.1} parent=1 // pred_fallthru
      _
    // Predicated region
    $region6: #{tpu_custom_call.1} parent=1 // pred_check
      _
    $region7: #{tpu_custom_call.1} parent=1 // pred_check_branch
      %22 = sbr.rel (0) target = $region9
    $region8: #{tpu_custom_call.1} parent=1 // pred_region
      _
    $region9: #{tpu_custom_call.1} parent=1 // pred_fallthru
      _
    // Predicated region
    $region10: #{tpu_custom_call.1} parent=1 // pred_check
      _
    $region11: #{tpu_custom_call.1} parent=1 // pred_check_branch
      %24 = sbr.rel (0) target = $region13
    $region12: #{tpu_custom_call.1} parent=1 // pred_region
      %25 = dma.done [#allocation3], 256
    $region13: #{tpu_custom_call.1} parent=1 // pred_fallthru
      _
    %v26 = vld [vmem:[#allocation2] sm:$0xff]
    %v27 = vld [vmem:[#allocation2 + $0x8] sm:$0xff]
    %v28 = vmul.f32 %v26, %v26
    %v29 = vmul.f32 %v27, %v27
    %30 = vadd.xlane.f32.xlu0 %v28
    %v31 = vpop.xlane.xlu0 %30
    %32 = vadd.xlane.f32.xlu0 %v29
    %v33 = vpop.xlane.xlu0 %32
    %v34 = vrcp.pop 128.0
    %v35 = vmul.f32 %v31, %v34
    %v36 = vmul.f32 %v33, %v34
    %v37 = vrsqrt.pop %v35
    %v38 = vmul.f32 %v35, %v37
    %vm39 = vcmp.eq.f32.partialorder %v35, inf
    %v40 = vsel %vm39, %v35, %v38
    %vm41 = vcmp.eq.f32.partialorder %v35, 0.0
    %v42 = vand.u32 %v35, 2147483648
    %v43 = vsel %vm41, %v42, %v40
    %v44 = vrsqrt.pop %v36
    %v45 = vmul.f32 %v36, %v44
    %vm46 = vcmp.eq.f32.partialorder %v36, inf
    %v47 = vsel %vm46, %v36, %v45
    %vm48 = vcmp.eq.f32.partialorder %v36, 0.0
    %v49 = vand.u32 %v36, 2147483648
    %v50 = vsel %vm48, %v49, %v47
    %v51 = vadd.f32 %v43, 1e-05
    %v52 = vadd.f32 %v50, 1e-05
    %v53 = vrcp.pop %v51
    %v54 = vrcp.pop %v52
    %v55 = vmul.f32 %v26, %v53
    %v56 = vmul.f32 %v27, %v54
    %v57 = vld [vmem:[%s1] sm:$0x1]
    %v59 = vlaneseq
    %v60 = vshrl.u32 %v59, 7
    %v61 = vsub.s32 0, %v60
    %v62 = vrot.slane %v57, %v61
    %v64 = vmul.f32 %v55, %v62
    %v65 = vmul.f32 %v56, %v62
    %66 = vst [vmem:[#allocation5] sm:$0xff] %v64
    %67 = vst [vmem:[#allocation5 + $0x8] sm:$0xff] %v65
    // Predicated region
    $region14: #{tpu_custom_call.1} parent=1 // pred_check
      _
    $region15: #{tpu_custom_call.1} parent=1 // pred_check_branch
      %69 = sbr.rel (0) target = $region17
    $region16: #{tpu_custom_call.1} parent=1 // pred_region
      %s71 = ssub.s32 256, 256
      %72 = vsyncadd [#allocation4], %s71
      %s73 = sshll.u32 [#allocation5], 4
      %s74 = int_to_ptr.vmem [resolvable:$true] %s73
      %79 = dma.vmem_to_hbm [thread:$0]  %s74, 256, %s2, [#allocation4], 128, 128, 8
    $region17: #{tpu_custom_call.1} parent=1 // pred_fallthru
      _
    // Predicated region
    $region18: #{tpu_custom_call.1} parent=1 // pred_check
      _
    $region19: #{tpu_custom_call.1} parent=1 // pred_check_branch
      %81 = sbr.rel (0) target = $region21
    $region20: #{tpu_custom_call.1} parent=1 // pred_region
      %82 = dma.done [#allocation4], 256
    $region21: #{tpu_custom_call.1} parent=1 // pred_fallthru
      _
    %83 = vsyncpa [#allocation3], 1
    %84 = vsyncpa [#allocation4], 1

</llo_original>
